<compile_context>
chip_gen: v5e
topology: v5e:2x2
jax: 0.10.0
libtpu: 0.0.40
codegen_flags: <defaults>
</compile_context>

<pallas_src>
import jax
import jax.numpy as jnp
from jax.experimental import pallas as pl
from jax.experimental.pallas import tpu as pltpu


def _round_up(a, m):
    return -(-a // m) * m


def linear_regression_forward(x, w, b, *, target_tile_bytes=8 << 20,
                              small_problem_bytes=1 << 20, force_pallas=False):
    """out = x @ w.T + b.   x: (B, D), w: (1, D), b: (1,)  ->  (B, 1)."""
    B, D = x.shape
    itemsize = x.dtype.itemsize
    out_dtype = x.dtype

    # Tiny problems: pallas_call launch + single-grid-step overhead dominates;
    # a fused XLA matvec is strictly faster at this scale.
    if not force_pallas and B * D * itemsize < small_problem_bytes:
        return x @ w.T + b

    # ---- tiling -------------------------------------------------------------
    # Feature tile: whole D when modest; otherwise 128-lane chunks streamed over
    # a reduction grid axis with an accumulator (keeps tiles in VMEM for any D).
    TD_MAX = 4096                       # 16 KiB per row per chunk, upper bound
    td = D if D <= TD_MAX else TD_MAX
    d_steps = pl.cdiv(D, td)
    need_d_mask = (D % td) != 0         # ragged last feature chunk -> mask it

    # Batch tile: ~target_tile_bytes of x per grid step (amortizes pipeline
    # step overhead; 8 MiB -> 16 MiB double-buffered, comfortably under the
    # 32 MiB scoped-VMEM limit on every generation incl. v7x's 64 MiB VMEM),
    # capped so the batch grid keeps several steps for megacore sharding.
    tb = max(8, (target_tile_bytes // max(td * itemsize, 1)) // 8 * 8)
    tb = min(tb, max(256, _round_up(pl.cdiv(B, 4), 8)))
    tb = min(tb, _round_up(B, 8))
    b_steps = pl.cdiv(B, tb)

    def kernel(x_ref, w_ref, b_ref, o_ref, acc_ref):
        """x_ref: (tb, td), w_ref: (1, td), b_ref: (1,) SMEM,
        o_ref: (tb, 1), acc_ref: (tb, 1) f32 scratch."""
        k = pl.program_id(1)

        @pl.when(k == 0)
        def _init():
            acc_ref[...] = jnp.zeros_like(acc_ref)

        # VPU elementwise multiply + lane-axis (XLU) reduction; no MXU needed,
        # x is consumed exactly once from HBM in its native layout.
        prod = x_ref[...].astype(jnp.float32) * w_ref[...].astype(jnp.float32)
        if need_d_mask:
            col = jax.lax.broadcasted_iota(jnp.int32, prod.shape, 1) + k * td
            prod = jnp.where(col < D, prod, 0.0)
        acc_ref[...] += jnp.sum(prod, axis=-1, keepdims=True)

        @pl.when(k == pl.num_programs(1) - 1)
        def _finalize():
            o_ref[...] = (acc_ref[...] + b_ref[0]).astype(o_ref.dtype)

    out = pl.pallas_call(
        kernel,
        out_shape=jax.ShapeDtypeStruct((B, 1), out_dtype),
        grid_spec=pltpu.PrefetchScalarGridSpec(
            num_scalar_prefetch=0,
            grid=(b_steps, d_steps),            # reduction (feature) axis last
            in_specs=[
                pl.BlockSpec((tb, td), lambda i, k: (i, k)),           # x tiles
                pl.BlockSpec((1, td), lambda i, k: (0, k)),            # weights
                pl.BlockSpec(memory_space=pltpu.MemorySpace.SMEM),     # bias
            ],
            out_specs=pl.BlockSpec((tb, 1), lambda i, k: (i, 0)),
            scratch_shapes=[pltpu.VMEM((tb, 1), jnp.float32)],
        ),
        compiler_params=pltpu.CompilerParams(
            # Independent batch tiles shard across both TCs on v7x; feature
            # axis is a reduction -> "arbitrary".
            dimension_semantics=("parallel", "arbitrary"),
            vmem_limit_bytes=32 * 1024 * 1024,
        ),
    )(x, w, b)
    return out


if __name__ == "__main__":
    key = jax.random.PRNGKey(0)
    kx, kw, kb = jax.random.split(key, 3)

    batch = 8
    input_size = 32  # feature dimension of the linear regression

    # Deterministic synthetic inputs (shapes follow nn.Linear(input_size, 1)).
    x = jax.random.normal(kx, (batch, input_size), dtype=jnp.float32)
    w = jax.random.normal(kw, (1, input_size), dtype=jnp.float32) * 0.1
    b = jax.random.normal(kb, (1,), dtype=jnp.float32) * 0.1

    # force_pallas=True so the kernel (not the small-problem XLA fast path)
    # is exercised at this toy size.
    out = linear_regression_forward(x, w, b, force_pallas=True)
    out = jax.block_until_ready(out)

    ref = x @ w.T + b
    assert out.shape == (batch, 1)
    assert jnp.allclose(out, ref, atol=1e-5, rtol=1e-5)

    # Ragged batch: exercises a partial trailing batch tile (no input padding).
    batch2 = 300
    x2 = jax.random.normal(kx, (batch2, input_size), dtype=jnp.float32)
    out2 = jax.block_until_ready(
        linear_regression_forward(x2, w, b, force_pallas=True))
    ref2 = x2 @ w.T + b
    assert out2.shape == (batch2, 1)
    assert jnp.allclose(out2, ref2, atol=1e-5, rtol=1e-5)

    print("KERNEL_OK")
</pallas_src>

<mosaic_0001>
module attributes {stable_mosaic.version = 11 : i64} {
  func.func @kernel(%arg0: i32, %arg1: i32, %arg2: memref<8x32xf32, #tpu.memory_space<vmem>>, %arg3: memref<1x32xf32, #tpu.memory_space<vmem>>, %arg4: memref<1xf32, #tpu.memory_space<smem>>, %arg5: memref<8x1xf32, #tpu.memory_space<vmem>>, %arg6: memref<8x1xf32, #tpu.memory_space<vmem>>) attributes {dimension_semantics = [#tpu.dimension_semantics<parallel>, #tpu.dimension_semantics<arbitrary>], iteration_bounds = array<i64: 1, 1>, scalar_prefetch = 0 : i64, scratch_operands = 1 : i64, tpu.core_type = #tpu.core_type<tc>, window_params = [{transform_indices = @transform_0, window_bounds = array<i64: 8, 32>}, {transform_indices = @transform_1, window_bounds = array<i64: 1, 32>}, {transform_indices = @transform_2, window_bounds = array<i64: 1>}, {transform_indices = @transform_3, window_bounds = array<i64: 8, 1>}]} {
    %c0_i32 = arith.constant 0 : i32
    %0 = arith.cmpi eq, %arg1, %c0_i32 : i32
    %1 = arith.extui %0 : i1 to i32
    %c0_i32_0 = arith.constant 0 : i32
    %2 = arith.cmpi ne, %1, %c0_i32_0 : i32
    scf.if %2 {
      %cst_10 = arith.constant 0.000000e+00 : f32
      %15 = vector.broadcast %cst_10 : f32 to vector<8x1xf32>
      %c0_11 = arith.constant 0 : index
      %c0_12 = arith.constant 0 : index
      %16 = vector.load %arg6[%c0_11, %c0_12] : memref<8x1xf32, #tpu.memory_space<vmem>>, vector<8x1xf32>
      tpu.vector_store %arg6[%c0_11, %c0_12], %15 {strides = array<i32>} : memref<8x1xf32, #tpu.memory_space<vmem>>, vector<8x1xf32>,
    } else {
    }
    %c0 = arith.constant 0 : index
    %c0_1 = arith.constant 0 : index
    %3 = vector.load %arg2[%c0, %c0_1] : memref<8x32xf32, #tpu.memory_space<vmem>>, vector<8x32xf32>
    %c0_2 = arith.constant 0 : index
    %c0_3 = arith.constant 0 : index
    %4 = vector.load %arg3[%c0_2, %c0_3] : memref<1x32xf32, #tpu.memory_space<vmem>>, vector<1x32xf32>
    %5 = vector.broadcast %4 : vector<1x32xf32> to vector<8x32xf32>
    %6 = arith.mulf %3, %5 : vector<8x32xf32>
    %c0_4 = arith.constant 0 : index
    %c0_5 = arith.constant 0 : index
    %7 = vector.load %arg6[%c0_4, %c0_5] : memref<8x1xf32, #tpu.memory_space<vmem>>, vector<8x1xf32>
    %cst = arith.constant dense<0.000000e+00> : vector<8xf32>
    %8 = vector.multi_reduction <add>, %6, %cst [1] : vector<8x32xf32> to vector<8xf32>
    %9 = vector.shape_cast %8 : vector<8xf32> to vector<8x1xf32>
    %10 = arith.addf %7, %9 : vector<8x1xf32>
    %c0_6 = arith.constant 0 : index
    %c0_7 = arith.constant 0 : index
    %11 = vector.load %arg6[%c0_6, %c0_7] : memref<8x1xf32, #tpu.memory_space<vmem>>, vector<8x1xf32>
    tpu.vector_store %arg6[%c0_6, %c0_7], %10 {strides = array<i32>} : memref<8x1xf32, #tpu.memory_space<vmem>>, vector<8x1xf32>,
    %c0_i32_8 = arith.constant 0 : i32
    %12 = arith.cmpi eq, %arg1, %c0_i32_8 : i32
    %13 = arith.extui %12 : i1 to i32
    %c0_i32_9 = arith.constant 0 : i32
    %14 = arith.cmpi ne, %13, %c0_i32_9 : i32
    scf.if %14 {
      %c0_10 = arith.constant 0 : index
      %c0_11 = arith.constant 0 : index
      %15 = vector.load %arg6[%c0_10, %c0_11] : memref<8x1xf32, #tpu.memory_space<vmem>>, vector<8x1xf32>
      %c0_12 = arith.constant 0 : index
      %16 = memref.load %arg4[%c0_12] : memref<1xf32, #tpu.memory_space<smem>>
      %17 = vector.broadcast %16 : f32 to vector<8x1xf32>
      %18 = arith.addf %15, %17 : vector<8x1xf32>
      %c0_13 = arith.constant 0 : index
      %c0_14 = arith.constant 0 : index
      %19 = vector.load %arg5[%c0_13, %c0_14] : memref<8x1xf32, #tpu.memory_space<vmem>>, vector<8x1xf32>
      tpu.vector_store %arg5[%c0_13, %c0_14], %18 {strides = array<i32>} : memref<8x1xf32, #tpu.memory_space<vmem>>, vector<8x1xf32>,
    } else {
    }
    return
  }
  func.func @transform_0(%arg0: i32, %arg1: i32) -> (i32, i32) {
    %c0_i32 = arith.constant 0 : i32
    return %arg0, %arg1 : i32, i32
  }
  func.func @transform_1(%arg0: i32, %arg1: i32) -> (i32, i32) {
    %c0_i32 = arith.constant 0 : i32
    %c0_i32_0 = arith.constant 0 : i32
    return %c0_i32, %arg1 : i32, i32
  }
  func.func @transform_2(%arg0: i32, %arg1: i32) -> i32 {
    %c0_i32 = arith.constant 0 : i32
    %c0_i32_0 = arith.constant 0 : i32
    return %c0_i32 : i32
  }
  func.func @transform_3(%arg0: i32, %arg1: i32) -> (i32, i32) {
    %c0_i32 = arith.constant 0 : i32
    %c0_i32_0 = arith.constant 0 : i32
    return %arg0, %c0_i32 : i32, i32
  }
}

</mosaic_0001>

<llo_original>
// kernel: tpu_custom_call.1
$region0: #{tpu_custom_call.1}
  #allocation0 [shape = 'u32[]', space=smem, size = 0x4, offset = 0x4, fixed_abs, tag = 'smem constant byte address 0x4 - core index']
  #allocation1 [shape = 'u32[72,128]{1,0:T(1,128)}', space=vmem, size = 0x9000, scoped, tag = 'internal scratch']
  #allocation2 [shape = 'f32[8,1]{1,0:T(8,128)}', space=vmem, size = 0x1000, scoped, tag = 'scratch operand']
  #allocation3 [shape = 'f32[1]{0:T(128)S(6)}', space=smem, size = 0x200, scoped, tag = 'scoped memory for tpu_custom_call.1']
  %s0 = inlined_call_operand.hbm [shape: f32[8,32], index: 0, kind: input, shape index: {}]
  %s1 = inlined_call_operand.vmem [shape: f32[1,32], index: 1, kind: input, shape index: {}]
  %s2 = inlined_call_operand.<no memory space> [shape: f32[1], index: 2, kind: input, shape index: {}]
  %s3 = inlined_call_operand.vmem [shape: f32[8,1], index: 3, kind: output, shape index: {}]
  %s4 = sld [smem:[#allocation0]]
  $region34: #{tpu_custom_call.1} parent=0
    _
  %s6 = ssub.s32 1, %s4
  %s7 = scalar_select 0, %s6, %s4
  %8 = sst [smem:[#allocation3]] %s2
  $region1: #{tpu_custom_call.1} parent=0
    #allocation4 [shape = 'u8[4096]{0}', space=vmem, size = 0x1000, scoped, tag = 'input window, operand 0, single buffered']
    #allocation5 [shape = 's32[1]{0}', space=sflag, size = 0x4, scoped, tag = 'scoped memory for tpu_custom_call.1']
    %9 = vsyncpa [#allocation5], 0
    // Predicated region
    $region2: #{tpu_custom_call.1} parent=1 // pred_check
      _
    $region3: #{tpu_custom_call.1} parent=1 // pred_check_branch
      %11 = sbr.rel (0) target = $region5
    $region4: #{tpu_custom_call.1} parent=1 // pred_region
      %13 = vsyncadd [#allocation5], 0
      %s15 = sshll.u32 %s0, 4
      %s16 = int_to_ptr.hbm [resolvable:$true] %s15
      %s17 = sshll.u32 [#allocation4], 4
      %s18 = int_to_ptr.vmem [resolvable:$true] %s17
      %20 = dma.hbm_to_vmem [thread:$0]  %s16, 128, %s18, [#allocation5]
    $region5: #{tpu_custom_call.1} parent=1 // pred_fallthru
      _
    // Predicated region
    $region6: #{tpu_custom_call.1} parent=1 // pred_check
      _
    $region7: #{tpu_custom_call.1} parent=1 // pred_check_branch
      %22 = sbr.rel (0) target = $region9
    $region8: #{tpu_custom_call.1} parent=1 // pred_region
      _
    $region9: #{tpu_custom_call.1} parent=1 // pred_fallthru
      _
    // Predicated region
    $region10: #{tpu_custom_call.1} parent=1 // pred_check
      _
    $region11: #{tpu_custom_call.1} parent=1 // pred_check_branch
      %24 = sbr.rel (0) target = $region13
    $region12: #{tpu_custom_call.1} parent=1 // pred_region
      _
    $region13: #{tpu_custom_call.1} parent=1 // pred_fallthru
      _
    // Predicated region
    $region14: #{tpu_custom_call.1} parent=1 // pred_check
      _
    $region15: #{tpu_custom_call.1} parent=1 // pred_check_branch
      %26 = sbr.rel (0) target = $region17
    $region16: #{tpu_custom_call.1} parent=1 // pred_region
      %28 = dma.done [#allocation5], 128
    $region17: #{tpu_custom_call.1} parent=1 // pred_fallthru
      _
    %p29 = scmp.eq.s32.totalorder 0, 0
    // Predicated region
    $region18: #{tpu_custom_call.1} parent=1 // pred_check
      %p30 = pneg %p29
    $region19: #{tpu_custom_call.1} parent=1 // pred_check_branch
      %32 = sbr.rel (%p30) target = $region21
    $region20: #{tpu_custom_call.1} parent=1 // pred_region
      %vm33 = vcmask 7168
      %34 = vst.msk [vmem:[#allocation2] sm:$0xff] %vm33, 0.0
    $region21: #{tpu_custom_call.1} parent=1 // pred_fallthru
      _
    %v35 = vld [vmem:[#allocation4] sm:$0xff]
    %v36 = vld [vmem:[%s1] sm:$0x1]
    %v38 = vperm.slane %v36, 0
    %v40 = vmul.f32 %v35, %v38
    %v41 = vld [vmem:[#allocation2] sm:$0xff]
    %vm42 = vcmask 261120
    %v43 = vsel %vm42, %v40, 0.0
    %44 = vadd.xlane.f32.xlu0 %v43
    %v45 = vpop.xlane.xlu0 %44
    %v46 = vadd.f32 %v41, %v45
    %vm47 = vcmask 7168
    %48 = vst.msk [vmem:[#allocation2] sm:$0xff] %vm47, %v46
    // Predicated region
    $region22: #{tpu_custom_call.1} parent=1 // pred_check
      %p49 = pneg %p29
    $region23: #{tpu_custom_call.1} parent=1 // pred_check_branch
      %51 = sbr.rel (%p49) target = $region25
    $region24: #{tpu_custom_call.1} parent=1 // pred_region
      %v52 = vld [vmem:[#allocation2] sm:$0xff]
      %s53 = sld [smem:[#allocation3]]
      %v54 = vstv %s53
      %v55 = vadd.f32 %v52, %v54
      %56 = vst.msk [vmem:[%s3] sm:$0xff] %vm47, %v55
    $region25: #{tpu_custom_call.1} parent=1 // pred_fallthru
      _
    // Predicated region
    $region26: #{tpu_custom_call.1} parent=1 // pred_check
      _
    $region27: #{tpu_custom_call.1} parent=1 // pred_check_branch
      %58 = sbr.rel (0) target = $region29
    $region28: #{tpu_custom_call.1} parent=1 // pred_region
      _
    $region29: #{tpu_custom_call.1} parent=1 // pred_fallthru
      _
    // Predicated region
    $region30: #{tpu_custom_call.1} parent=1 // pred_check
      _
    $region31: #{tpu_custom_call.1} parent=1 // pred_check_branch
      %60 = sbr.rel (0) target = $region33
    $region32: #{tpu_custom_call.1} parent=1 // pred_region
      _
    $region33: #{tpu_custom_call.1} parent=1 // pred_fallthru
      _
    %61 = vsyncpa [#allocation5], 1

</llo_original>
